<compile_context>
chip_gen: v7x
topology: tpu7x:2x2x1
jax: 0.10.0
libtpu: 0.0.40
codegen_flags: <defaults>
</compile_context>

<pallas_src>
import math
import jax
import jax.numpy as jnp
from jax.experimental import pallas as pl
from jax.experimental.pallas import tpu as pltpu


def temporal_decay_kernel(d_ref, wneg_ref, bneg_ref, o_ref):
    # d_ref   : (TM, L) lane-dense packed input tile, native dtype (L = pack*D)
    # wneg_ref: (L, L)  block-diagonal, NEGATED, normalized, transposed weight
    # bneg_ref: (1, L)  tiled, NEGATED, normalized bias (f32)
    #
    # y = -(d @ w_n.T + b_n)  =>  exp(-relu(-y)) == exp(min(y, 0))
    y = jnp.dot(d_ref[...], wneg_ref[...], preferred_element_type=jnp.float32)
    y = y + bneg_ref[...]
    o_ref[...] = jnp.exp(jnp.minimum(y, 0.0)).astype(o_ref.dtype)


def _choose_tm(m_rows, row_bytes):
    """Pick the packed-row tile size (rows are already lane-dense)."""
    target_bytes = 2 << 20                      # ~2 MiB/tile; 2 in + 2 out bufs = 8 MiB
    tm = target_bytes // max(1, row_bytes)
    tm = max(256, min(8192, tm))
    tm = max(8, (tm // 8) * 8)                  # sublane granularity
    # v7x megacore: guarantee >= 2 grid steps when there is enough work to split.
    if m_rows > 512:
        half = ((pl.cdiv(m_rows, 2) + 7) // 8) * 8
        tm = min(tm, max(8, half))
    if m_rows <= tm:
        return m_rows                           # single full block (always legal)
    return tm


def temporal_decay(d, W, b, *, tm=None):
    """d: (..., D) array; W: (D, D); b: (D,). Returns exp(-relu(linear(d)))."""
    orig_shape = d.shape
    D = orig_shape[-1]
    d2 = d.reshape(-1, D)                       # (M, D)
    M = d2.shape[0]

    # --- one-time normalization; fold in the transpose AND the negation ------
    Wf = W.astype(jnp.float32)
    bf = b.astype(jnp.float32)
    w_neg = -(Wf * jax.lax.rsqrt(jnp.sum(Wf * Wf))).T       # (D, D) f32
    b_neg = -(bf * jax.lax.rsqrt(jnp.sum(bf * bf)))         # (D,)   f32

    # --- lane-dense repack: (M, D) -> (m_rows, pack*D) with pack*D == 128 ----
    if D < 128 and 128 % D == 0:
        pack = 128 // D
    else:
        pack = 1                                # fall back to native layout
    L = pack * D

    M_pad = pl.cdiv(M, pack) * pack
    if M_pad != M:
        d2 = jnp.pad(d2, ((0, M_pad - M), (0, 0)))
    m_rows = M_pad // pack
    d_packed = d2.reshape(m_rows, L)

    if pack > 1:
        w_blk = jnp.kron(jnp.eye(pack, dtype=jnp.float32), w_neg)   # (L, L) block-diag
        b_blk = jnp.tile(b_neg, pack).reshape(1, L)
    else:
        w_blk = w_neg
        b_blk = b_neg.reshape(1, L)
    w_blk = w_blk.astype(d.dtype)               # MXU consumes d's native dtype

    if tm is None:
        TM = _choose_tm(m_rows, L * d_packed.dtype.itemsize)
    else:
        TM = min(tm, m_rows)
        if TM < m_rows:
            TM = max(8, (TM // 8) * 8)          # keep (8,128) block constraint
    grid_m = pl.cdiv(m_rows, TM)

    out = pl.pallas_call(
        temporal_decay_kernel,
        out_shape=jax.ShapeDtypeStruct((m_rows, L), d.dtype),
        grid_spec=pltpu.PrefetchScalarGridSpec(
            num_scalar_prefetch=0,
            grid=(grid_m,),
            in_specs=[
                pl.BlockSpec((TM, L), lambda i: (i, 0)),    # packed d tile (pipelined)
                pl.BlockSpec((L, L), lambda i: (0, 0)),     # block-diag weight (resident)
                pl.BlockSpec((1, L), lambda i: (0, 0)),     # tiled bias (resident)
            ],
            out_specs=pl.BlockSpec((TM, L), lambda i: (i, 0)),
        ),
        compiler_params=pltpu.CompilerParams(
            # Row tiles are independent -> "parallel" lets v7x shard across both
            # TensorCores; neutral on v5e/v6e.
            dimension_semantics=("parallel",)),
    )(d_packed, w_blk, b_blk)

    out = out.reshape(M_pad, D)[:M]             # drop pack-padding rows
    return out.reshape(orig_shape)


def init_params(key, input_size, dtype=jnp.float32):
    # Mirrors reset_parameters(): uniform(-stdv, stdv), stdv = 1/sqrt(input_size)
    stdv = 1.0 / math.sqrt(input_size)
    kw, kb = jax.random.split(key)
    W = jax.random.uniform(kw, (input_size, input_size), dtype=dtype,
                           minval=-stdv, maxval=stdv)
    b = jax.random.uniform(kb, (input_size,), dtype=dtype,
                           minval=-stdv, maxval=stdv)
    return W, b


def reference(d, W, b):
    # Pure-JAX reference of the PyTorch forward pass.
    w_n = W / jnp.linalg.norm(W)
    b_n = b / jnp.linalg.norm(b)
    gamma = jax.nn.relu(d @ w_n.T + b_n)
    return jnp.exp(-gamma)


if __name__ == "__main__":
    key = jax.random.PRNGKey(0)
    k_param, k_d1, k_d2 = jax.random.split(key, 3)

    # --- small demo at module-consistent shapes: batch=2, seq=8, hidden=32 ---
    B, T, D = 2, 8, 32
    W, b = init_params(k_param, D)
    d = jax.random.uniform(k_d1, (B, T, D), dtype=jnp.float32)   # time-gap input

    out = jax.block_until_ready(temporal_decay(d, W, b))
    ref = reference(d, W, b)
    assert out.shape == d.shape
    assert jnp.allclose(out, ref, atol=1e-5, rtol=1e-5), "mismatch vs reference"

    # --- exercise padding (M=995 -> 996) + multi-step pipeline (ragged tail) ---
    d_big = jax.random.uniform(k_d2, (5, 199, D), dtype=jnp.float32)  # M = 995
    out_big = jax.block_until_ready(temporal_decay(d_big, W, b, tm=64))
    ref_big = reference(d_big, W, b)
    assert out_big.shape == d_big.shape
    assert jnp.allclose(out_big, ref_big, atol=1e-5, rtol=1e-5), "tiled mismatch"

    print("KERNEL_OK")
</pallas_src>

<mosaic_0001>
module attributes {stable_mosaic.version = 11 : i64} {
  func.func @temporal_decay_kernel(%arg0: i32, %arg1: memref<4x128xf32, #tpu.memory_space<vmem>>, %arg2: memref<128x128xf32, #tpu.memory_space<vmem>>, %arg3: memref<1x128xf32, #tpu.memory_space<vmem>>, %arg4: memref<4x128xf32, #tpu.memory_space<vmem>>) attributes {dimension_semantics = [#tpu.dimension_semantics<parallel>], iteration_bounds = array<i64: 1>, scalar_prefetch = 0 : i64, scratch_operands = 0 : i64, tpu.core_type = #tpu.core_type<tc>, window_params = [{transform_indices = @transform_0, window_bounds = array<i64: 4, 128>}, {pipeline_mode = #tpu.pipeline_mode<synchronous>, transform_indices = @transform_1, window_bounds = array<i64: 128, 128>}, {pipeline_mode = #tpu.pipeline_mode<synchronous>, transform_indices = @transform_2, window_bounds = array<i64: 1, 128>}, {transform_indices = @transform_3, window_bounds = array<i64: 4, 128>}]} {
    %c0 = arith.constant 0 : index
    %c0_0 = arith.constant 0 : index
    %0 = vector.load %arg1[%c0, %c0_0] : memref<4x128xf32, #tpu.memory_space<vmem>>, vector<4x128xf32>
    %c0_1 = arith.constant 0 : index
    %c0_2 = arith.constant 0 : index
    %1 = vector.load %arg2[%c0_1, %c0_2] : memref<128x128xf32, #tpu.memory_space<vmem>>, vector<128x128xf32>
    %cst = arith.constant dense<0.000000e+00> : vector<4x128xf32>
    %2 = tpu.matmul %0, %1, %cst {dimension_numbers = #tpu.dot_dimension_numbers<[1], [0], [0], [1], [0, 0, 1, 1], [], []>} : vector<4x128xf32>, vector<128x128xf32>, vector<4x128xf32> -> vector<4x128xf32>
    %c0_3 = arith.constant 0 : index
    %c0_4 = arith.constant 0 : index
    %3 = vector.load %arg3[%c0_3, %c0_4] : memref<1x128xf32, #tpu.memory_space<vmem>>, vector<1x128xf32>
    %4 = vector.broadcast %3 : vector<1x128xf32> to vector<4x128xf32>
    %5 = arith.addf %2, %4 : vector<4x128xf32>
    %cst_5 = arith.constant 0.000000e+00 : f32
    %6 = vector.broadcast %cst_5 : f32 to vector<4x128xf32>
    %7 = arith.minimumf %5, %6 : vector<4x128xf32>
    %8 = math.exp %7 : vector<4x128xf32>
    %c0_6 = arith.constant 0 : index
    %c0_7 = arith.constant 0 : index
    %9 = vector.load %arg4[%c0_6, %c0_7] : memref<4x128xf32, #tpu.memory_space<vmem>>, vector<4x128xf32>
    tpu.vector_store %arg4[%c0_6, %c0_7], %8 {strides = array<i32>} : memref<4x128xf32, #tpu.memory_space<vmem>>, vector<4x128xf32>,
    return
  }
  func.func @transform_0(%arg0: i32) -> (i32, i32) {
    %c0_i32 = arith.constant 0 : i32
    %c0_i32_0 = arith.constant 0 : i32
    return %arg0, %c0_i32 : i32, i32
  }
  func.func @transform_1(%arg0: i32) -> (i32, i32) {
    %c0_i32 = arith.constant 0 : i32
    %c0_i32_0 = arith.constant 0 : i32
    %c0_i32_1 = arith.constant 0 : i32
    return %c0_i32, %c0_i32_0 : i32, i32
  }
  func.func @transform_2(%arg0: i32) -> (i32, i32) {
    %c0_i32 = arith.constant 0 : i32
    %c0_i32_0 = arith.constant 0 : i32
    %c0_i32_1 = arith.constant 0 : i32
    return %c0_i32, %c0_i32_0 : i32, i32
  }
  func.func @transform_3(%arg0: i32) -> (i32, i32) {
    %c0_i32 = arith.constant 0 : i32
    %c0_i32_0 = arith.constant 0 : i32
    return %arg0, %c0_i32 : i32, i32
  }
}

</mosaic_0001>

<llo_original>
// kernel: tpu_custom_call.1
$region0: #{tpu_custom_call.1}
  #allocation0 [shape = 'u32[]', space=smem, size = 0x4, offset = 0x4, fixed_abs, tag = 'smem constant byte address 0x4 - core index']
  #allocation1 [shape = 'u32[144,128]{1,0:T(1,128)}', space=vmem, size = 0x12000, scoped, tag = 'internal scratch']
  %s0 = inlined_call_operand.hbm [shape: f32[4,128], index: 0, kind: input, shape index: {}]
  %s1 = inlined_call_operand.hbm [shape: f32[128,128], index: 1, kind: input, shape index: {}]
  %s2 = inlined_call_operand.vmem [shape: f32[1,128], index: 2, kind: input, shape index: {}]
  %s3 = inlined_call_operand.hbm [shape: f32[4,128], index: 3, kind: output, shape index: {}]
  %s4 = sld [smem:[#allocation0]]
  $region30: #{tpu_custom_call.1} parent=0
    _
  %s6 = ssub.s32 1, %s4
  %s7 = scalar_select 0, %s6, %s4
  $region1: #{tpu_custom_call.1} parent=0
    #allocation2 [shape = 'u8[2048]{0}', space=vmem, size = 0x800, scoped, tag = 'input window, operand 0, single buffered']
    #allocation3 [shape = 's32[1]{0}', space=sflag, size = 0x4, scoped, tag = 'scoped memory for tpu_custom_call.1']
    #allocation4 [shape = 's32[1]{0}', space=sflag, size = 0x4, scoped, tag = 'scoped memory for tpu_custom_call.1']
    #allocation5 [shape = 'u8[65536]{0}', space=vmem, size = 0x10000, scoped, tag = 'input window, operand 1, single buffered']
    #allocation6 [shape = 's32[1]{0}', space=sflag, size = 0x4, scoped, tag = 'scoped memory for tpu_custom_call.1']
    #allocation7 [shape = 'u8[2048]{0}', space=vmem, size = 0x800, scoped, tag = 'output window, operand 0, single buffered']
    %8 = vsyncpa [#allocation3], 0
    %9 = vsyncpa [#allocation6], 0
    %10 = vsyncpa [#allocation4], 0
    // Predicated region
    $region2: #{tpu_custom_call.1} parent=1 // pred_check
      _
    $region3: #{tpu_custom_call.1} parent=1 // pred_check_branch
      %12 = sbr.rel (0) target = $region5
    $region4: #{tpu_custom_call.1} parent=1 // pred_region
      %s14 = ssub.s32 64, 64
      %15 = vsyncadd [#allocation3], %s14
      %s17 = sshll.u32 [#allocation2], 4
      %s18 = int_to_ptr.vmem [resolvable:$true] %s17
      %20 = dma.hbm_to_vmem [thread:$0]  %s0, 64, %s18, [#allocation3]
    $region5: #{tpu_custom_call.1} parent=1 // pred_fallthru
      _
    // Predicated region
    $region6: #{tpu_custom_call.1} parent=1 // pred_check
      _
    $region7: #{tpu_custom_call.1} parent=1 // pred_check_branch
      %22 = sbr.rel (0) target = $region9
    $region8: #{tpu_custom_call.1} parent=1 // pred_region
      %s24 = ssub.s32 2048, 2048
      %25 = vsyncadd [#allocation6], %s24
      %s26 = sshll.u32 [#allocation5], 4
      %s27 = int_to_ptr.vmem [resolvable:$true] %s26
      %32 = dma.hbm_to_vmem [thread:$0]  %s1, 2048, %s27, [#allocation6], 128, 128, 8
    $region9: #{tpu_custom_call.1} parent=1 // pred_fallthru
      _
    // Predicated region
    $region10: #{tpu_custom_call.1} parent=1 // pred_check
      _
    $region11: #{tpu_custom_call.1} parent=1 // pred_check_branch
      %34 = sbr.rel (0) target = $region13
    $region12: #{tpu_custom_call.1} parent=1 // pred_region
      _
    $region13: #{tpu_custom_call.1} parent=1 // pred_fallthru
      _
    // Predicated region
    $region14: #{tpu_custom_call.1} parent=1 // pred_check
      _
    $region15: #{tpu_custom_call.1} parent=1 // pred_check_branch
      %36 = sbr.rel (0) target = $region17
    $region16: #{tpu_custom_call.1} parent=1 // pred_region
      %37 = dma.done [#allocation3], 64
    $region17: #{tpu_custom_call.1} parent=1 // pred_fallthru
      _
    // Predicated region
    $region18: #{tpu_custom_call.1} parent=1 // pred_check
      _
    $region19: #{tpu_custom_call.1} parent=1 // pred_check_branch
      %39 = sbr.rel (0) target = $region21
    $region20: #{tpu_custom_call.1} parent=1 // pred_region
      %40 = dma.done [#allocation6], 2048
    $region21: #{tpu_custom_call.1} parent=1 // pred_fallthru
      _
    %v41 = vld [vmem:[#allocation2] sm:$0xf]
    %v42 = vld [vmem:[#allocation5] sm:$0xff]
    %v43 = vld [vmem:[#allocation5 + $0x8] sm:$0xff]
    %v44 = vld [vmem:[#allocation5 + $0x10] sm:$0xff]
    %v45 = vld [vmem:[#allocation5 + $0x18] sm:$0xff]
    %v46 = vld [vmem:[#allocation5 + $0x20] sm:$0xff]
    %v47 = vld [vmem:[#allocation5 + $0x28] sm:$0xff]
    %v48 = vld [vmem:[#allocation5 + $0x30] sm:$0xff]
    %v49 = vld [vmem:[#allocation5 + $0x38] sm:$0xff]
    %v50 = vld [vmem:[#allocation5 + $0x40] sm:$0xff]
    %v51 = vld [vmem:[#allocation5 + $0x48] sm:$0xff]
    %v52 = vld [vmem:[#allocation5 + $0x50] sm:$0xff]
    %v53 = vld [vmem:[#allocation5 + $0x58] sm:$0xff]
    %v54 = vld [vmem:[#allocation5 + $0x60] sm:$0xff]
    %v55 = vld [vmem:[#allocation5 + $0x68] sm:$0xff]
    %v56 = vld [vmem:[#allocation5 + $0x70] sm:$0xff]
    %v57 = vld [vmem:[#allocation5 + $0x78] sm:$0xff]
    %v58 = vld [vmem:[%s2] sm:$0x1]
    %v60 = vlaneseq
    %v61 = vshrl.u32 %v60, 7
    %v62 = vsub.s32 0, %v61
    %v63 = vrot.slane %v58, %v62
    %65 = vmatprep.subr.mxu0 0.0
    %66 = vmatpush1.msra.mxu0 %v42
    %67 = vmatprep.subr.mxu0 0.0
    %68 = vmatpush1.msra.mxu0 %v43
    %69 = vmatprep.subr.mxu0 0.0
    %70 = vmatpush1.msra.mxu0 %v44
    %71 = vmatprep.subr.mxu0 0.0
    %72 = vmatpush1.msra.mxu0 %v45
    %73 = vmatprep.subr.mxu0 0.0
    %74 = vmatpush1.msra.mxu0 %v46
    %75 = vmatprep.subr.mxu0 0.0
    %76 = vmatpush1.msra.mxu0 %v47
    %77 = vmatprep.subr.mxu0 0.0
    %78 = vmatpush1.msra.mxu0 %v48
    %79 = vmatprep.subr.mxu0 0.0
    %80 = vmatpush1.msra.mxu0 %v49
    %81 = vmatprep.subr.mxu0 0.0
    %82 = vmatpush1.msra.mxu0 %v50
    %83 = vmatprep.subr.mxu0 0.0
    %84 = vmatpush1.msra.mxu0 %v51
    %85 = vmatprep.subr.mxu0 0.0
    %86 = vmatpush1.msra.mxu0 %v52
    %87 = vmatprep.subr.mxu0 0.0
    %88 = vmatpush1.msra.mxu0 %v53
    %89 = vmatprep.subr.mxu0 0.0
    %90 = vmatpush1.msra.mxu0 %v54
    %91 = vmatprep.subr.mxu0 0.0
    %92 = vmatpush1.msra.mxu0 %v55
    %93 = vmatprep.subr.mxu0 0.0
    %94 = vmatpush1.msra.mxu0 %v56
    %95 = vmatprep.subr.mxu0 0.0
    %96 = vmatpush1.msra.mxu0 %v57
    %97 = vmatprep.subr.mxu0 0.0
    %98 = vmatpush1.msra.mxu0 0.0
    %99 = vmatprep.subr.mxu0 0.0
    %100 = vmatpush1.msra.mxu0 0.0
    %101 = vmatprep.subr.mxu0 0.0
    %102 = vmatpush1.msra.mxu0 0.0
    %103 = vmatprep.subr.mxu0 0.0
    %104 = vmatpush1.msra.mxu0 0.0
    %105 = vmatprep.subr.mxu0 0.0
    %106 = vmatpush1.msra.mxu0 0.0
    %107 = vmatprep.subr.mxu0 0.0
    %108 = vmatpush1.msra.mxu0 0.0
    %109 = vmatprep.subr.mxu0 0.0
    %110 = vmatpush1.msra.mxu0 0.0
    %111 = vmatprep.subr.mxu0 0.0
    %112 = vmatpush1.msra.mxu0 0.0
    %113 = vmatprep.subr.mxu0 0.0
    %114 = vmatpush1.msra.mxu0 0.0
    %115 = vmatprep.subr.mxu0 0.0
    %116 = vmatpush1.msra.mxu0 0.0
    %117 = vmatprep.subr.mxu0 0.0
    %118 = vmatpush1.msra.mxu0 0.0
    %119 = vmatprep.subr.mxu0 0.0
    %120 = vmatpush1.msra.mxu0 0.0
    %121 = vmatprep.subr.mxu0 0.0
    %122 = vmatpush1.msra.mxu0 0.0
    %123 = vmatprep.subr.mxu0 0.0
    %124 = vmatpush1.msra.mxu0 0.0
    %125 = vmatprep.subr.mxu0 0.0
    %126 = vmatpush1.msra.mxu0 0.0
    %127 = vmatprep.subr.mxu0 0.0
    %128 = vmatpush1.msra.mxu0 0.0
    %129 = vmatprep.mubr.f32.mxu0 0.0
    %130 = vmatmul.mubr.f32.gmra.mrb[0].mxu0 %v41
    %v131 = vpop.f32.mrb[0].mxu0
    %v132 = vadd.f32 %v63, %v131
    %v133 = vpop.f32.mrb[0].mxu0
    %134 = vdwg.mxu0
    %v135 = vmin.f32 %v132, 0.0
    %v136 = vmul.f32 %v135, 1.442695
    %v137 = vpow.pop %v136
    %138 = vst [vmem:[#allocation7] sm:$0xf] %v137
    // Predicated region
    $region22: #{tpu_custom_call.1} parent=1 // pred_check
      _
    $region23: #{tpu_custom_call.1} parent=1 // pred_check_branch
      %140 = sbr.rel (0) target = $region25
    $region24: #{tpu_custom_call.1} parent=1 // pred_region
      %s142 = ssub.s32 64, 64
      %143 = vsyncadd [#allocation4], %s142
      %s145 = sshll.u32 [#allocation7], 4
      %s146 = int_to_ptr.vmem [resolvable:$true] %s145
      %148 = dma.vmem_to_hbm [thread:$0]  %s146, 64, %s3, [#allocation4]
    $region25: #{tpu_custom_call.1} parent=1 // pred_fallthru
      _
    // Predicated region
    $region26: #{tpu_custom_call.1} parent=1 // pred_check
      _
    $region27: #{tpu_custom_call.1} parent=1 // pred_check_branch
      %150 = sbr.rel (0) target = $region29
    $region28: #{tpu_custom_call.1} parent=1 // pred_region
      %151 = dma.done [#allocation4], 64
    $region29: #{tpu_custom_call.1} parent=1 // pred_fallthru
      _
    %152 = vsyncpa [#allocation3], 1
    %153 = vsyncpa [#allocation6], 1
    %154 = vsyncpa [#allocation4], 1

</llo_original>
